<compile_context>
chip_gen: v7x
topology: tpu7x:2x2x1
jax: 0.10.0
libtpu: 0.0.40
codegen_flags: <defaults>
</compile_context>

<pallas_src>
import jax
import jax.numpy as jnp
from jax import lax
from jax.experimental import pallas as pl
from jax.experimental.pallas import tpu as pltpu


def _iou_loss_kernel(n_ref, pred_ref, gt_ref, out_ref):
    # n_ref:    (1,)   int32 SMEM (scalar prefetch) -- number of valid boxes.
    # pred_ref: (4, bs, 128) f32 VMEM -- coordinate planes [x1, y1, x2, y2].
    # gt_ref:   (4, bs, 128) f32 VMEM -- same layout.
    # out_ref:  (1, 1) f32 SMEM -- this tile's partial loss sum.
    i = pl.program_id(0)
    bs = pred_ref.shape[1]

    px1, py1, px2, py2 = pred_ref[0], pred_ref[1], pred_ref[2], pred_ref[3]
    gx1, gy1, gx2, gy2 = gt_ref[0], gt_ref[1], gt_ref[2], gt_ref[3]

    # --- get_ious (base-class semantics) ---
    x1 = jnp.maximum(px1, gx1)
    y1 = jnp.maximum(py1, gy1)
    x2 = jnp.minimum(px2, gx2)
    y2 = jnp.minimum(py2, gy2)
    w = jnp.maximum(x2 - x1 + 1.0, 0.0)
    h = jnp.maximum(y2 - y1 + 1.0, 0.0)
    intersection = w * h
    pred_areas = (px2 - px1 + 1.0) * (py2 - py1 + 1.0)
    gt_areas = (gx2 - gx1 + 1.0) * (gy2 - gy1 + 1.0)
    unions = pred_areas + gt_areas - intersection
    ious = intersection / unions

    # --- get_loss (concrete: 1 - IoU) ---
    loss = 1.0 - ious                                   # (bs, 128), lane-dense

    # Partial sum for this tile.  All padded boxes live in the last tile (and
    # zero-padded boxes contribute exactly 0 anyway), so only the last tile
    # pays for the mask.
    out_ref[0, 0] = jnp.sum(loss)

    @pl.when(i == pl.num_programs(0) - 1)
    def _():
        n = n_ref[0]
        row = lax.broadcasted_iota(jnp.int32, loss.shape, 0)
        lane = lax.broadcasted_iota(jnp.int32, loss.shape, 1)
        box_idx = (i * bs + row) * 128 + lane
        out_ref[0, 0] = jnp.sum(jnp.where(box_idx < n, loss, 0.0))


class BaseIouLossPallas:
    """Pallas TPU implementation of BaseIouLoss.forward (with get_loss = 1 - IoU)."""

    LANES = 128
    MAX_BLOCK_ROWS = 512   # 512 rows x 128 lanes = 65536 boxes / step (~1 MiB / input block)

    def __init__(self, eps=1e-7):
        # eps kept for parity with the PyTorch module (only consumed by
        # get_enclose(), which the plain-IoU forward path never calls).
        self.eps = float(eps)

    def __call__(self, pred_boxes, gt_boxes):
        assert pred_boxes.shape == gt_boxes.shape
        assert pred_boxes.ndim == 2 and pred_boxes.shape[1] == 4
        n = pred_boxes.shape[0]
        assert n >= 1, "mean over zero boxes is undefined"

        lanes = self.LANES
        n_rows = -(-n // lanes)                               # sublane rows of boxes
        bs = min(self.MAX_BLOCK_ROWS, ((n_rows + 7) // 8) * 8)
        rows_pad = ((n_rows + bs - 1) // bs) * bs
        npad = rows_pad * lanes
        num_tiles = rows_pad // bs

        def relayout(b):
            # (N, 4) -> (4, rows_pad, 128): coordinate planes major, boxes dense
            # over sublane x lane.  Zero padding is harmless (zero boxes produce
            # loss exactly 0) and is masked in-kernel on the last tile anyway.
            b = b.astype(jnp.float32)
            b = jnp.pad(b, ((0, npad - n), (0, 0)))
            return b.T.reshape(4, rows_pad, lanes)

        p = relayout(pred_boxes)
        g = relayout(gt_boxes)
        n_arr = jnp.array([n], jnp.int32)

        partials = pl.pallas_call(
            _iou_loss_kernel,
            out_shape=jax.ShapeDtypeStruct((num_tiles, 1), jnp.float32),
            grid_spec=pltpu.PrefetchScalarGridSpec(
                num_scalar_prefetch=1,
                grid=(num_tiles,),
                in_specs=[
                    pl.BlockSpec((4, bs, lanes), lambda i, n_ref: (0, i, 0)),
                    pl.BlockSpec((4, bs, lanes), lambda i, n_ref: (0, i, 0)),
                ],
                out_specs=pl.BlockSpec(
                    (1, 1), lambda i, n_ref: (i, 0),
                    memory_space=pltpu.MemorySpace.SMEM),
            ),
            compiler_params=pltpu.CompilerParams(
                dimension_semantics=("parallel",)),
        )(n_arr, p, g)

        return jnp.sum(partials) / n


def _reference_loss(pred_boxes, gt_boxes):
    # Pure-JAX reference mirroring the PyTorch base-class math.
    x1 = jnp.maximum(pred_boxes[:, 0], gt_boxes[:, 0])
    y1 = jnp.maximum(pred_boxes[:, 1], gt_boxes[:, 1])
    x2 = jnp.minimum(pred_boxes[:, 2], gt_boxes[:, 2])
    y2 = jnp.minimum(pred_boxes[:, 3], gt_boxes[:, 3])
    w = jnp.clip(x2 - x1 + 1.0, 0.0)
    h = jnp.clip(y2 - y1 + 1.0, 0.0)
    inter = w * h
    pa = (pred_boxes[:, 2] - pred_boxes[:, 0] + 1.0) * (pred_boxes[:, 3] - pred_boxes[:, 1] + 1.0)
    ga = (gt_boxes[:, 2] - gt_boxes[:, 0] + 1.0) * (gt_boxes[:, 3] - gt_boxes[:, 1] + 1.0)
    ious = inter / (pa + ga - inter)
    return jnp.mean(1.0 - ious)


if __name__ == "__main__":
    key = jax.random.PRNGKey(0)
    loss_fn = BaseIouLossPallas(eps=1e-7)

    def make_boxes(k, n):
        k1, k2 = jax.random.split(k)
        xy = jax.random.uniform(k1, (n, 2), jnp.float32, minval=0.0, maxval=32.0)
        wh = jax.random.uniform(k2, (n, 2), jnp.float32, minval=1.0, maxval=16.0)
        return jnp.concatenate([xy, xy + wh], axis=1)   # well-formed (N, 4) boxes

    for n_boxes in (8, 300):   # 300 exercises the partial-lane mask path
        kp, kg, key = jax.random.split(key, 3)
        pred_boxes = make_boxes(kp, n_boxes)
        gt_boxes = make_boxes(kg, n_boxes)

        loss = loss_fn(pred_boxes, gt_boxes)
        jax.block_until_ready(loss)

        ref = _reference_loss(pred_boxes, gt_boxes)
        assert jnp.allclose(loss, ref, rtol=1e-5, atol=1e-5), (n_boxes, loss, ref)

    print("KERNEL_OK")
</pallas_src>

<mosaic_0001>
module attributes {stable_mosaic.version = 11 : i64} {
  func.func @_iou_loss_kernel(%arg0: i32, %arg1: memref<1xi32, #tpu.memory_space<smem>>, %arg2: memref<4x8x128xf32, #tpu.memory_space<vmem>>, %arg3: memref<4x8x128xf32, #tpu.memory_space<vmem>>, %arg4: memref<1x1xf32, #tpu.memory_space<smem>>) attributes {dimension_semantics = [#tpu.dimension_semantics<parallel>], iteration_bounds = array<i64: 1>, scalar_prefetch = 1 : i64, scratch_operands = 0 : i64, tpu.core_type = #tpu.core_type<tc>, window_params = [{transform_indices = @transform_0, window_bounds = array<i64: 4, 8, 128>}, {transform_indices = @transform_1, window_bounds = array<i64: 4, 8, 128>}, {transform_indices = @transform_2, window_bounds = array<i64: 1, 1>}]} {
    %c0 = arith.constant 0 : index
    %c0_0 = arith.constant 0 : index
    %c0_1 = arith.constant 0 : index
    %0 = vector.load %arg2[%c0, %c0_0, %c0_1] : memref<4x8x128xf32, #tpu.memory_space<vmem>>, vector<1x8x128xf32>
    %1 = vector.shape_cast %0 : vector<1x8x128xf32> to vector<8x128xf32>
    %c1 = arith.constant 1 : index
    %c0_2 = arith.constant 0 : index
    %c0_3 = arith.constant 0 : index
    %2 = vector.load %arg2[%c1, %c0_2, %c0_3] : memref<4x8x128xf32, #tpu.memory_space<vmem>>, vector<1x8x128xf32>
    %3 = vector.shape_cast %2 : vector<1x8x128xf32> to vector<8x128xf32>
    %c2 = arith.constant 2 : index
    %c0_4 = arith.constant 0 : index
    %c0_5 = arith.constant 0 : index
    %4 = vector.load %arg2[%c2, %c0_4, %c0_5] : memref<4x8x128xf32, #tpu.memory_space<vmem>>, vector<1x8x128xf32>
    %5 = vector.shape_cast %4 : vector<1x8x128xf32> to vector<8x128xf32>
    %c3 = arith.constant 3 : index
    %c0_6 = arith.constant 0 : index
    %c0_7 = arith.constant 0 : index
    %6 = vector.load %arg2[%c3, %c0_6, %c0_7] : memref<4x8x128xf32, #tpu.memory_space<vmem>>, vector<1x8x128xf32>
    %7 = vector.shape_cast %6 : vector<1x8x128xf32> to vector<8x128xf32>
    %c0_8 = arith.constant 0 : index
    %c0_9 = arith.constant 0 : index
    %c0_10 = arith.constant 0 : index
    %8 = vector.load %arg3[%c0_8, %c0_9, %c0_10] : memref<4x8x128xf32, #tpu.memory_space<vmem>>, vector<1x8x128xf32>
    %9 = vector.shape_cast %8 : vector<1x8x128xf32> to vector<8x128xf32>
    %c1_11 = arith.constant 1 : index
    %c0_12 = arith.constant 0 : index
    %c0_13 = arith.constant 0 : index
    %10 = vector.load %arg3[%c1_11, %c0_12, %c0_13] : memref<4x8x128xf32, #tpu.memory_space<vmem>>, vector<1x8x128xf32>
    %11 = vector.shape_cast %10 : vector<1x8x128xf32> to vector<8x128xf32>
    %c2_14 = arith.constant 2 : index
    %c0_15 = arith.constant 0 : index
    %c0_16 = arith.constant 0 : index
    %12 = vector.load %arg3[%c2_14, %c0_15, %c0_16] : memref<4x8x128xf32, #tpu.memory_space<vmem>>, vector<1x8x128xf32>
    %13 = vector.shape_cast %12 : vector<1x8x128xf32> to vector<8x128xf32>
    %c3_17 = arith.constant 3 : index
    %c0_18 = arith.constant 0 : index
    %c0_19 = arith.constant 0 : index
    %14 = vector.load %arg3[%c3_17, %c0_18, %c0_19] : memref<4x8x128xf32, #tpu.memory_space<vmem>>, vector<1x8x128xf32>
    %15 = vector.shape_cast %14 : vector<1x8x128xf32> to vector<8x128xf32>
    %16 = arith.maximumf %1, %9 : vector<8x128xf32>
    %17 = arith.maximumf %3, %11 : vector<8x128xf32>
    %18 = arith.minimumf %5, %13 : vector<8x128xf32>
    %19 = arith.minimumf %7, %15 : vector<8x128xf32>
    %20 = arith.subf %18, %16 : vector<8x128xf32>
    %cst = arith.constant 1.000000e+00 : f32
    %21 = vector.broadcast %cst : f32 to vector<8x128xf32>
    %22 = arith.addf %20, %21 : vector<8x128xf32>
    %cst_20 = arith.constant 0.000000e+00 : f32
    %23 = vector.broadcast %cst_20 : f32 to vector<8x128xf32>
    %24 = arith.maximumf %22, %23 : vector<8x128xf32>
    %25 = arith.subf %19, %17 : vector<8x128xf32>
    %cst_21 = arith.constant 1.000000e+00 : f32
    %26 = vector.broadcast %cst_21 : f32 to vector<8x128xf32>
    %27 = arith.addf %25, %26 : vector<8x128xf32>
    %cst_22 = arith.constant 0.000000e+00 : f32
    %28 = vector.broadcast %cst_22 : f32 to vector<8x128xf32>
    %29 = arith.maximumf %27, %28 : vector<8x128xf32>
    %30 = arith.mulf %24, %29 : vector<8x128xf32>
    %31 = arith.subf %5, %1 : vector<8x128xf32>
    %cst_23 = arith.constant 1.000000e+00 : f32
    %32 = vector.broadcast %cst_23 : f32 to vector<8x128xf32>
    %33 = arith.addf %31, %32 : vector<8x128xf32>
    %34 = arith.subf %7, %3 : vector<8x128xf32>
    %cst_24 = arith.constant 1.000000e+00 : f32
    %35 = vector.broadcast %cst_24 : f32 to vector<8x128xf32>
    %36 = arith.addf %34, %35 : vector<8x128xf32>
    %37 = arith.mulf %33, %36 : vector<8x128xf32>
    %38 = arith.subf %13, %9 : vector<8x128xf32>
    %cst_25 = arith.constant 1.000000e+00 : f32
    %39 = vector.broadcast %cst_25 : f32 to vector<8x128xf32>
    %40 = arith.addf %38, %39 : vector<8x128xf32>
    %41 = arith.subf %15, %11 : vector<8x128xf32>
    %cst_26 = arith.constant 1.000000e+00 : f32
    %42 = vector.broadcast %cst_26 : f32 to vector<8x128xf32>
    %43 = arith.addf %41, %42 : vector<8x128xf32>
    %44 = arith.mulf %40, %43 : vector<8x128xf32>
    %45 = arith.addf %37, %44 : vector<8x128xf32>
    %46 = arith.subf %45, %30 : vector<8x128xf32>
    %47 = arith.divf %30, %46 : vector<8x128xf32>
    %cst_27 = arith.constant 1.000000e+00 : f32
    %48 = vector.broadcast %cst_27 : f32 to vector<8x128xf32>
    %49 = arith.subf %48, %47 : vector<8x128xf32>
    %50 = vector.shape_cast %49 : vector<8x128xf32> to vector<1x8x128xf32>
    %cst_28 = arith.constant dense<0.000000e+00> : vector<1xf32>
    %51 = vector.multi_reduction <add>, %50, %cst_28 [1, 2] : vector<1x8x128xf32> to vector<1xf32>
    %52 = vector.shape_cast %51 : vector<1xf32> to vector<1x1x1xf32>
    %53 = vector.extract %52[0, 0, 0] : f32 from vector<1x1x1xf32>
    %c0_29 = arith.constant 0 : index
    %c0_30 = arith.constant 0 : index
    %54 = memref.load %arg4[%c0_29, %c0_30] : memref<1x1xf32, #tpu.memory_space<smem>>
    memref.store %53, %arg4[%c0_29, %c0_30] : memref<1x1xf32, #tpu.memory_space<smem>>
    %c0_i32 = arith.constant 0 : i32
    %55 = arith.cmpi eq, %arg0, %c0_i32 : i32
    %56 = arith.extui %55 : i1 to i32
    %c0_i32_31 = arith.constant 0 : i32
    %57 = arith.cmpi ne, %56, %c0_i32_31 : i32
    scf.if %57 {
      %c0_32 = arith.constant 0 : index
      %58 = memref.load %arg1[%c0_32] : memref<1xi32, #tpu.memory_space<smem>>
      %59 = tpu.iota {dimensions = array<i32: 0>} : vector<8x128xi32>
      %60 = tpu.iota {dimensions = array<i32: 1>} : vector<8x128xi32>
      %c8_i32 = arith.constant 8 : i32
      %61 = arith.muli %arg0, %c8_i32 : i32
      %62 = vector.broadcast %61 : i32 to vector<8x128xi32>
      %63 = arith.addi %62, %59 : vector<8x128xi32>
      %c128_i32 = arith.constant 128 : i32
      %64 = vector.broadcast %c128_i32 : i32 to vector<8x128xi32>
      %65 = arith.muli %63, %64 : vector<8x128xi32>
      %66 = arith.addi %65, %60 : vector<8x128xi32>
      %67 = vector.broadcast %58 : i32 to vector<8x128xi32>
      %68 = arith.cmpi slt, %66, %67 : vector<8x128xi32>
      %cst_33 = arith.constant 0.000000e+00 : f32
      %69 = vector.broadcast %cst_33 : f32 to vector<8x128xf32>
      %70 = arith.select %68, %49, %69 : vector<8x128xi1>, vector<8x128xf32>
      %71 = vector.shape_cast %70 : vector<8x128xf32> to vector<1x8x128xf32>
      %cst_34 = arith.constant dense<0.000000e+00> : vector<1xf32>
      %72 = vector.multi_reduction <add>, %71, %cst_34 [1, 2] : vector<1x8x128xf32> to vector<1xf32>
      %73 = vector.shape_cast %72 : vector<1xf32> to vector<1x1x1xf32>
      %74 = vector.extract %73[0, 0, 0] : f32 from vector<1x1x1xf32>
      %c0_35 = arith.constant 0 : index
      %c0_36 = arith.constant 0 : index
      %75 = memref.load %arg4[%c0_35, %c0_36] : memref<1x1xf32, #tpu.memory_space<smem>>
      memref.store %74, %arg4[%c0_35, %c0_36] : memref<1x1xf32, #tpu.memory_space<smem>>
    } else {
    }
    return
  }
  func.func @transform_0(%arg0: i32, %arg1: memref<1xi32, #tpu.memory_space<smem>>) -> (i32, i32, i32) {
    %c0_i32 = arith.constant 0 : i32
    %c0_i32_0 = arith.constant 0 : i32
    %c0_i32_1 = arith.constant 0 : i32
    return %c0_i32, %arg0, %c0_i32_0 : i32, i32, i32
  }
  func.func @transform_1(%arg0: i32, %arg1: memref<1xi32, #tpu.memory_space<smem>>) -> (i32, i32, i32) {
    %c0_i32 = arith.constant 0 : i32
    %c0_i32_0 = arith.constant 0 : i32
    %c0_i32_1 = arith.constant 0 : i32
    return %c0_i32, %arg0, %c0_i32_0 : i32, i32, i32
  }
  func.func @transform_2(%arg0: i32, %arg1: memref<1xi32, #tpu.memory_space<smem>>) -> (i32, i32) {
    %c0_i32 = arith.constant 0 : i32
    %c0_i32_0 = arith.constant 0 : i32
    return %arg0, %c0_i32 : i32, i32
  }
}

</mosaic_0001>

<llo_original>
// kernel: tpu_custom_call.1
$region0: #{tpu_custom_call.1}
  #allocation0 [shape = 'u32[]', space=smem, size = 0x4, offset = 0x4, fixed_abs, tag = 'smem constant byte address 0x4 - core index']
  #allocation1 [shape = 'u32[144,128]{1,0:T(1,128)}', space=vmem, size = 0x12000, scoped, tag = 'internal scratch']
  #allocation2 [shape = 's32[1]{0}', space=sflag, size = 0x4, scoped, tag = 'scoped memory for tpu_custom_call.1']
  #allocation3 [shape = 's32[1]{0:T(128)S(6)}', space=smem, size = 0x200, scoped, tag = 'prefetched SMEM operand 0']
  %s0 = inlined_call_operand.<no memory space> [shape: s32[1], index: 0, kind: input, shape index: {}]
  %s1 = inlined_call_operand.hbm [shape: f32[4,8,128], index: 1, kind: input, shape index: {}]
  %s2 = inlined_call_operand.hbm [shape: f32[4,8,128], index: 2, kind: input, shape index: {}]
  %s3 = inlined_call_operand.hbm [shape: f32[1,1], index: 3, kind: output, shape index: {}]
  %s4 = sld [smem:[#allocation0]]
  $region30: #{tpu_custom_call.1} parent=0
    _
  %s6 = ssub.s32 1, %s4
  %s7 = scalar_select 0, %s6, %s4
  %8 = sst [smem:[#allocation3]] %s0
  $region1: #{tpu_custom_call.1} parent=0
    #allocation4 [shape = 'u8[16384]{0}', space=vmem, size = 0x4000, scoped, tag = 'input window, operand 1, single buffered']
    #allocation5 [shape = 's32[1]{0}', space=sflag, size = 0x4, scoped, tag = 'scoped memory for tpu_custom_call.1']
    #allocation6 [shape = 's32[1]{0}', space=sflag, size = 0x4, scoped, tag = 'scoped memory for tpu_custom_call.1']
    #allocation7 [shape = 'u8[16384]{0}', space=vmem, size = 0x4000, scoped, tag = 'input window, operand 2, single buffered']
    #allocation8 [shape = 's32[1]{0}', space=sflag, size = 0x4, scoped, tag = 'scoped memory for tpu_custom_call.1']
    #allocation9 [shape = 'u8[512]{0}', space=smem, size = 0x200, scoped, tag = 'output window, operand 0, single buffered']
    %9 = vsyncpa [#allocation5], 0
    %10 = vsyncpa [#allocation8], 0
    %11 = vsyncpa [#allocation6], 0
    // Predicated region
    $region2: #{tpu_custom_call.1} parent=1 // pred_check
      _
    $region3: #{tpu_custom_call.1} parent=1 // pred_check_branch
      %13 = sbr.rel (0) target = $region5
    $region4: #{tpu_custom_call.1} parent=1 // pred_region
      %s15 = ssub.s32 512, 512
      %16 = vsyncadd [#allocation5], %s15
      %s17 = sshll.u32 [#allocation4], 4
      %s18 = int_to_ptr.vmem [resolvable:$true] %s17
      %23 = dma.hbm_to_vmem [thread:$0]  %s1, 512, %s18, [#allocation5], 128, 128, 8
    $region5: #{tpu_custom_call.1} parent=1 // pred_fallthru
      _
    // Predicated region
    $region6: #{tpu_custom_call.1} parent=1 // pred_check
      _
    $region7: #{tpu_custom_call.1} parent=1 // pred_check_branch
      %25 = sbr.rel (0) target = $region9
    $region8: #{tpu_custom_call.1} parent=1 // pred_region
      %s27 = ssub.s32 512, 512
      %28 = vsyncadd [#allocation8], %s27
      %s29 = sshll.u32 [#allocation7], 4
      %s30 = int_to_ptr.vmem [resolvable:$true] %s29
      %35 = dma.hbm_to_vmem [thread:$0]  %s2, 512, %s30, [#allocation8], 128, 128, 8
    $region9: #{tpu_custom_call.1} parent=1 // pred_fallthru
      _
    // Predicated region
    $region10: #{tpu_custom_call.1} parent=1 // pred_check
      _
    $region11: #{tpu_custom_call.1} parent=1 // pred_check_branch
      %37 = sbr.rel (0) target = $region13
    $region12: #{tpu_custom_call.1} parent=1 // pred_region
      %38 = dma.done [#allocation5], 512
    $region13: #{tpu_custom_call.1} parent=1 // pred_fallthru
      _
    // Predicated region
    $region14: #{tpu_custom_call.1} parent=1 // pred_check
      _
    $region15: #{tpu_custom_call.1} parent=1 // pred_check_branch
      %40 = sbr.rel (0) target = $region17
    $region16: #{tpu_custom_call.1} parent=1 // pred_region
      %41 = dma.done [#allocation8], 512
    $region17: #{tpu_custom_call.1} parent=1 // pred_fallthru
      _
    %v42 = vld [vmem:[#allocation4] sm:$0xff]
    %s43 = scalar_lea.vmem [#allocation4], 8
    %v44 = vld [vmem:[%s43] sm:$0xff]
    %s45 = scalar_lea.vmem [#allocation4], 16
    %v46 = vld [vmem:[%s45] sm:$0xff]
    %s47 = scalar_lea.vmem [#allocation4], 24
    %v48 = vld [vmem:[%s47] sm:$0xff]
    %v49 = vld [vmem:[#allocation7] sm:$0xff]
    %s50 = scalar_lea.vmem [#allocation7], 8
    %v51 = vld [vmem:[%s50] sm:$0xff]
    %s52 = scalar_lea.vmem [#allocation7], 16
    %v53 = vld [vmem:[%s52] sm:$0xff]
    %s54 = scalar_lea.vmem [#allocation7], 24
    %v55 = vld [vmem:[%s54] sm:$0xff]
    %v56 = vmax.f32 %v42, %v49
    %v57 = vmax.f32 %v44, %v51
    %v58 = vmin.f32 %v46, %v53
    %v59 = vmin.f32 %v48, %v55
    %v60 = vsub.f32 %v58, %v56
    %v61 = vadd.f32 %v60, 1.0
    %v62 = vmax.f32 %v61, 0.0
    %v63 = vsub.f32 %v59, %v57
    %v64 = vadd.f32 %v63, 1.0
    %v65 = vmax.f32 %v64, 0.0
    %v66 = vmul.f32 %v62, %v65
    %v67 = vsub.f32 %v46, %v42
    %v68 = vadd.f32 %v67, 1.0
    %v69 = vsub.f32 %v48, %v44
    %v70 = vadd.f32 %v69, 1.0
    %v71 = vmul.f32 %v68, %v70
    %v72 = vsub.f32 %v53, %v49
    %v73 = vadd.f32 %v72, 1.0
    %v74 = vsub.f32 %v55, %v51
    %v75 = vadd.f32 %v74, 1.0
    %v76 = vmul.f32 %v73, %v75
    %v77 = vadd.f32 %v71, %v76
    %v78 = vsub.f32 %v77, %v66
    %v79 = vrcp.pop %v78
    %v80 = vmul.f32 %v66, %v79
    %v81 = vsub.f32 1.0, %v80
    %82 = vadd.xlane.f32.xlu0 %v81
    %v83 = vpop.xlane.xlu0 %82
    %v84 = vrot.slane %v83, 4
    %v85 = vadd.f32 %v83, %v84
    %v86 = vrot.slane %v85, 2
    %v87 = vadd.f32 %v85, %v86
    %v88 = vrot.slane %v87, 1
    %v89 = vadd.f32 %v87, %v88
    %s90 = vtos %v89
    %s91 = scalar_lea.smem [#allocation9], 0
    %92 = sst [smem:[%s91]] %s90
    %p93 = scmp.eq.s32.totalorder 0, 0
    // Predicated region
    $region18: #{tpu_custom_call.1} parent=1 // pred_check
      %p94 = pneg %p93
    $region19: #{tpu_custom_call.1} parent=1 // pred_check_branch
      %96 = sbr.rel (%p94) target = $region21
    $region20: #{tpu_custom_call.1} parent=1 // pred_region
      %s97 = sld [smem:[#allocation3]]
      %v98 = vlaneseq
      %v99 = vshrl.u32 %v98, 7
      %v100 = vlaneseq
      %v101 = vand.u32 %v100, 127
      %s102 = smul.u32 0, 8
      %v103 = vstv %s102
      %v104 = vadd.s32 %v103, %v99
      %v105 = vmul.u32 %v104, 128
      %v106 = vadd.s32 %v105, %v101
      %v107 = vstv %s97
      %vm108 = vcmp.lt.s32.totalorder %v106, %v107
      %v109 = vsel %vm108, %v81, 0.0
      %110 = vadd.xlane.f32.xlu0 %v109
      %v111 = vpop.xlane.xlu0 %110
      %v112 = vrot.slane %v111, 4
      %v113 = vadd.f32 %v111, %v112
      %v114 = vrot.slane %v113, 2
      %v115 = vadd.f32 %v113, %v114
      %v116 = vrot.slane %v115, 1
      %v117 = vadd.f32 %v115, %v116
      %s118 = vtos %v117
      %119 = sst [smem:[%s91]] %s118
    $region21: #{tpu_custom_call.1} parent=1 // pred_fallthru
      _
    // Predicated region
    $region22: #{tpu_custom_call.1} parent=1 // pred_check
      _
    $region23: #{tpu_custom_call.1} parent=1 // pred_check_branch
      %121 = sbr.rel (0) target = $region25
    $region24: #{tpu_custom_call.1} parent=1 // pred_region
      %s123 = ssub.s32 16, 16
      %124 = vsyncadd [#allocation6], %s123
      %127 = dma.smem_to_hbm [#allocation9], 16, %s3, [#allocation6]
    $region25: #{tpu_custom_call.1} parent=1 // pred_fallthru
      _
    // Predicated region
    $region26: #{tpu_custom_call.1} parent=1 // pred_check
      _
    $region27: #{tpu_custom_call.1} parent=1 // pred_check_branch
      %129 = sbr.rel (0) target = $region29
    $region28: #{tpu_custom_call.1} parent=1 // pred_region
      %130 = dma.done [#allocation6], 16
    $region29: #{tpu_custom_call.1} parent=1 // pred_fallthru
      _
    %131 = sfence
    %132 = vsyncpa [#allocation5], 1
    %133 = vsyncpa [#allocation8], 1
    %134 = vsyncpa [#allocation6], 1

</llo_original>
